<compile_context>
chip_gen: v5e
topology: v5e:2x2
jax: 0.10.0
libtpu: 0.0.40
codegen_flags: <defaults>
</compile_context>

<pallas_src>
import jax
import jax.numpy as jnp
from jax.experimental import pallas as pl
from jax.experimental.pallas import tpu as pltpu


def _make_sfm_kernel(alpha_flat, method):
    K = len(alpha_flat)
    inv_k = 1.0 / K

    if method == "alpha_mean":
        # Fold the mean's 1/K into the per-tap weight: one multiply-add per tap.
        w = [float(a) * inv_k for a in alpha_flat]

        def kernel(x_ref, o_ref):
            # x_ref: (K, tn, tm) native dtype; o_ref: (tn, tm) native dtype.
            acc = x_ref[0].astype(jnp.float32) * w[0]
            for k in range(1, K):
                acc = acc + x_ref[k].astype(jnp.float32) * w[k]
            o_ref[...] = acc.astype(o_ref.dtype)

    elif method == "max":

        def kernel(x_ref, o_ref):
            acc = x_ref[0]
            for k in range(1, K):
                acc = jnp.maximum(acc, x_ref[k])
            o_ref[...] = acc

    else:
        raise ValueError(f"Unknown method: {method}")

    return kernel


def sfm_forward(x, filter_hw, alpha_max=0.9, alpha_min=1.0, method="alpha_mean"):
    """Pallas implementation of SFM.forward for NCHW input."""
    if isinstance(filter_hw, int):
        fh = fw = int(filter_hw)
    else:
        fh, fw = int(filter_hw[0]), int(filter_hw[1])

    B, C, H, W = x.shape
    Ho, Wo = H // fh, W // fw
    K = fh * fw

    # torch.linspace(alpha_min, alpha_max, K) flattened row-major over (fh, fw).
    if K == 1:
        alpha_flat = [float(alpha_min)]
    else:
        step = (float(alpha_max) - float(alpha_min)) / (K - 1)
        alpha_flat = [float(alpha_min) + i * step for i in range(K)]

    # torch .unfold drops any remainder rows/cols.
    if H != Ho * fh or W != Wo * fw:
        x = x[:, :, : Ho * fh, : Wo * fw]

    N = B * C
    M = Ho * Wo

    # Single XLA transpose: window taps -> leading axis; output pixels stay contiguous
    # and lane-dense.  Surrounding reshapes are free.
    xr = jnp.transpose(x.reshape(N, Ho, fh, Wo, fw), (2, 4, 0, 1, 3)).reshape(K, N, M)

    # ---- tile selection (big blocks, bounded VMEM) -------------------------
    itemsize = jnp.dtype(x.dtype).itemsize
    vmem_budget = 6 * 1024 * 1024           # target for double-buffered in+out blocks

    tm = M if M <= 2048 else 2048            # lane dim: full extent or a 128-multiple
    max_block_elems = max(1, vmem_budget // (2 * (K + 1) * itemsize))
    tn_cap = max(1, max_block_elems // tm)

    if N <= 8:
        tn = N                               # full second-to-last dim (allowed)
    else:
        tn = min(N, tn_cap)
        if N >= 16:                          # keep >=2 grid steps (v7x: 2 TensorCores)
            tn = min(tn, (N + 1) // 2)
        tn = max(8, (tn // 8) * 8)           # sublane multiple; ragged edge is masked

    grid = (pl.cdiv(N, tn), pl.cdiv(M, tm))

    kernel = _make_sfm_kernel(alpha_flat, method)

    out2 = pl.pallas_call(
        kernel,
        out_shape=jax.ShapeDtypeStruct((N, M), x.dtype),
        grid=grid,
        in_specs=[pl.BlockSpec((K, tn, tm), lambda i, j: (0, i, j))],
        out_specs=pl.BlockSpec((tn, tm), lambda i, j: (i, j)),
        compiler_params=pltpu.CompilerParams(
            dimension_semantics=("parallel", "parallel"),
            vmem_limit_bytes=32 * 1024 * 1024,
        ),
    )(xr)

    return out2.reshape(B, C, Ho, Wo)


def sfm_ref(x, filter_hw, alpha_max=0.9, alpha_min=1.0, method="alpha_mean"):
    """Pure-JAX reference mirroring the PyTorch forward."""
    if isinstance(filter_hw, int):
        fh = fw = int(filter_hw)
    else:
        fh, fw = int(filter_hw[0]), int(filter_hw[1])
    B, C, H, W = x.shape
    Ho, Wo = H // fh, W // fw
    K = fh * fw
    xc = x[:, :, : Ho * fh, : Wo * fw]
    win = jnp.transpose(
        xc.reshape(B, C, Ho, fh, Wo, fw), (0, 1, 2, 4, 3, 5)
    ).reshape(B, C, Ho, Wo, K)
    if method == "max":
        return win.max(axis=-1)
    elif method == "alpha_mean":
        alpha = jnp.linspace(alpha_min, alpha_max, K, dtype=jnp.float32)
        out = (win.astype(jnp.float32) * alpha).mean(axis=-1)
        return out.astype(x.dtype)
    else:
        raise ValueError(f"Unknown method: {method}")


if __name__ == "__main__":
    key = jax.random.PRNGKey(0)
    # Small NCHW input consistent with an SFM pooling stage: B=2, C=4, H=W=16, filter=(2,2).
    x = jax.random.uniform(key, (2, 4, 16, 16), dtype=jnp.float32)
    filt = (2, 2)

    out = sfm_forward(x, filt, method="alpha_mean")
    out = jax.block_until_ready(out)
    ref = sfm_ref(x, filt, method="alpha_mean")
    assert out.shape == (2, 4, 8, 8) and out.dtype == x.dtype
    assert jnp.allclose(out, ref, atol=1e-5, rtol=1e-5)

    out_max = jax.block_until_ready(sfm_forward(x, filt, method="max"))
    ref_max = sfm_ref(x, filt, method="max")
    assert jnp.allclose(out_max, ref_max, atol=1e-6, rtol=1e-6)

    print("KERNEL_OK")
</pallas_src>

<mosaic_0001>
module attributes {stable_mosaic.version = 11 : i64} {
  func.func @kernel(%arg0: i32, %arg1: i32, %arg2: memref<4x8x64xf32, #tpu.memory_space<vmem>>, %arg3: memref<8x64xf32, #tpu.memory_space<vmem>>) attributes {dimension_semantics = [#tpu.dimension_semantics<parallel>, #tpu.dimension_semantics<parallel>], iteration_bounds = array<i64: 1, 1>, scalar_prefetch = 0 : i64, scratch_operands = 0 : i64, tpu.core_type = #tpu.core_type<tc>, window_params = [{transform_indices = @transform_0, window_bounds = array<i64: 4, 8, 64>}, {transform_indices = @transform_1, window_bounds = array<i64: 8, 64>}]} {
    %c0 = arith.constant 0 : index
    %c0_0 = arith.constant 0 : index
    %c0_1 = arith.constant 0 : index
    %0 = vector.load %arg2[%c0, %c0_0, %c0_1] : memref<4x8x64xf32, #tpu.memory_space<vmem>>, vector<1x8x64xf32>
    %1 = vector.shape_cast %0 : vector<1x8x64xf32> to vector<8x64xf32>
    %cst = arith.constant 2.500000e-01 : f32
    %2 = vector.broadcast %cst : f32 to vector<8x64xf32>
    %3 = arith.mulf %1, %2 : vector<8x64xf32>
    %c1 = arith.constant 1 : index
    %c0_2 = arith.constant 0 : index
    %c0_3 = arith.constant 0 : index
    %4 = vector.load %arg2[%c1, %c0_2, %c0_3] : memref<4x8x64xf32, #tpu.memory_space<vmem>>, vector<1x8x64xf32>
    %5 = vector.shape_cast %4 : vector<1x8x64xf32> to vector<8x64xf32>
    %cst_4 = arith.constant 0.24166666 : f32
    %6 = vector.broadcast %cst_4 : f32 to vector<8x64xf32>
    %7 = arith.mulf %5, %6 : vector<8x64xf32>
    %8 = arith.addf %3, %7 : vector<8x64xf32>
    %c2 = arith.constant 2 : index
    %c0_5 = arith.constant 0 : index
    %c0_6 = arith.constant 0 : index
    %9 = vector.load %arg2[%c2, %c0_5, %c0_6] : memref<4x8x64xf32, #tpu.memory_space<vmem>>, vector<1x8x64xf32>
    %10 = vector.shape_cast %9 : vector<1x8x64xf32> to vector<8x64xf32>
    %cst_7 = arith.constant 0.233333334 : f32
    %11 = vector.broadcast %cst_7 : f32 to vector<8x64xf32>
    %12 = arith.mulf %10, %11 : vector<8x64xf32>
    %13 = arith.addf %8, %12 : vector<8x64xf32>
    %c3 = arith.constant 3 : index
    %c0_8 = arith.constant 0 : index
    %c0_9 = arith.constant 0 : index
    %14 = vector.load %arg2[%c3, %c0_8, %c0_9] : memref<4x8x64xf32, #tpu.memory_space<vmem>>, vector<1x8x64xf32>
    %15 = vector.shape_cast %14 : vector<1x8x64xf32> to vector<8x64xf32>
    %cst_10 = arith.constant 2.250000e-01 : f32
    %16 = vector.broadcast %cst_10 : f32 to vector<8x64xf32>
    %17 = arith.mulf %15, %16 : vector<8x64xf32>
    %18 = arith.addf %13, %17 : vector<8x64xf32>
    %c0_11 = arith.constant 0 : index
    %c0_12 = arith.constant 0 : index
    %19 = vector.load %arg3[%c0_11, %c0_12] : memref<8x64xf32, #tpu.memory_space<vmem>>, vector<8x64xf32>
    tpu.vector_store %arg3[%c0_11, %c0_12], %18 {strides = array<i32>} : memref<8x64xf32, #tpu.memory_space<vmem>>, vector<8x64xf32>,
    return
  }
  func.func @transform_0(%arg0: i32, %arg1: i32) -> (i32, i32, i32) {
    %c0_i32 = arith.constant 0 : i32
    %c0_i32_0 = arith.constant 0 : i32
    return %c0_i32, %arg0, %arg1 : i32, i32, i32
  }
  func.func @transform_1(%arg0: i32, %arg1: i32) -> (i32, i32) {
    %c0_i32 = arith.constant 0 : i32
    return %arg0, %arg1 : i32, i32
  }
}

</mosaic_0001>

<llo_original>
// kernel: tpu_custom_call.1
$region0: #{tpu_custom_call.1}
  #allocation0 [shape = 'u32[]', space=smem, size = 0x4, offset = 0x4, fixed_abs, tag = 'smem constant byte address 0x4 - core index']
  #allocation1 [shape = 'u32[72,128]{1,0:T(1,128)}', space=vmem, size = 0x9000, scoped, tag = 'internal scratch']
  %s0 = inlined_call_operand.hbm [shape: f32[4,8,64], index: 0, kind: input, shape index: {}]
  %s1 = inlined_call_operand.hbm [shape: f32[8,64], index: 1, kind: output, shape index: {}]
  %s2 = sld [smem:[#allocation0]]
  $region18: #{tpu_custom_call.1} parent=0
    _
  %s4 = ssub.s32 1, %s2
  %s5 = scalar_select 0, %s4, %s2
  $region1: #{tpu_custom_call.1} parent=0
    #allocation2 [shape = 'u8[16384]{0}', space=vmem, size = 0x4000, scoped, tag = 'input window, operand 0, single buffered']
    #allocation3 [shape = 's32[1]{0}', space=sflag, size = 0x4, scoped, tag = 'scoped memory for tpu_custom_call.1']
    #allocation4 [shape = 's32[1]{0}', space=sflag, size = 0x4, scoped, tag = 'scoped memory for tpu_custom_call.1']
    #allocation5 [shape = 'u8[4096]{0}', space=vmem, size = 0x1000, scoped, tag = 'output window, operand 0, single buffered']
    %6 = vsyncpa [#allocation3], 0
    %7 = vsyncpa [#allocation4], 0
    // Predicated region
    $region2: #{tpu_custom_call.1} parent=1 // pred_check
      _
    $region3: #{tpu_custom_call.1} parent=1 // pred_check_branch
      %9 = sbr.rel (0) target = $region5
    $region4: #{tpu_custom_call.1} parent=1 // pred_region
      %11 = vsyncadd [#allocation3], 0
      %s12 = sshll.u32 %s0, 4
      %s13 = int_to_ptr.hbm [resolvable:$true] %s12
      %s14 = sshll.u32 [#allocation2], 4
      %s15 = int_to_ptr.vmem [resolvable:$true] %s14
      %20 = dma.hbm_to_vmem [thread:$0]  %s13, 512, %s15, [#allocation3], 128, 128, 8
    $region5: #{tpu_custom_call.1} parent=1 // pred_fallthru
      _
    // Predicated region
    $region6: #{tpu_custom_call.1} parent=1 // pred_check
      _
    $region7: #{tpu_custom_call.1} parent=1 // pred_check_branch
      %22 = sbr.rel (0) target = $region9
    $region8: #{tpu_custom_call.1} parent=1 // pred_region
      %24 = dma.done [#allocation3], 512
    $region9: #{tpu_custom_call.1} parent=1 // pred_fallthru
      _
    %v25 = vld [vmem:[#allocation2] sm:$0xff]
    %v26 = vmul.f32 %v25, 0.25
    %s27 = scalar_lea.vmem [#allocation2], 8
    %v28 = vld [vmem:[%s27] sm:$0xff]
    %v29 = vmul.f32 %v28, 0.24166666
    %v30 = vadd.f32 %v26, %v29
    %s31 = scalar_lea.vmem [#allocation2], 16
    %v32 = vld [vmem:[%s31] sm:$0xff]
    %v33 = vmul.f32 %v32, 0.23333333
    %v34 = vadd.f32 %v30, %v33
    %s35 = scalar_lea.vmem [#allocation2], 24
    %v36 = vld [vmem:[%s35] sm:$0xff]
    %v37 = vmul.f32 %v36, 0.225
    %v38 = vadd.f32 %v34, %v37
    %vm39 = vcmask 523264
    %40 = vst.msk [vmem:[#allocation5] sm:$0xff] %vm39, %v38
    // Predicated region
    $region10: #{tpu_custom_call.1} parent=1 // pred_check
      _
    $region11: #{tpu_custom_call.1} parent=1 // pred_check_branch
      %42 = sbr.rel (0) target = $region13
    $region12: #{tpu_custom_call.1} parent=1 // pred_region
      %44 = vsyncadd [#allocation4], 0
      %s46 = sshll.u32 [#allocation5], 4
      %s47 = int_to_ptr.vmem [resolvable:$true] %s46
      %s48 = sshll.u32 %s1, 4
      %s49 = int_to_ptr.hbm [resolvable:$true] %s48
      %51 = dma.vmem_to_hbm [thread:$0]  %s47, 128, %s49, [#allocation4]
    $region13: #{tpu_custom_call.1} parent=1 // pred_fallthru
      _
    // Predicated region
    $region14: #{tpu_custom_call.1} parent=1 // pred_check
      _
    $region15: #{tpu_custom_call.1} parent=1 // pred_check_branch
      %53 = sbr.rel (0) target = $region17
    $region16: #{tpu_custom_call.1} parent=1 // pred_region
      %55 = dma.done [#allocation4], 128
    $region17: #{tpu_custom_call.1} parent=1 // pred_fallthru
      _
    %56 = vsyncpa [#allocation3], 1
    %57 = vsyncpa [#allocation4], 1

</llo_original>
